<compile_context>
chip_gen: v5e
topology: v5e:2x2
jax: 0.10.0
libtpu: 0.0.40
codegen_flags: <defaults>
</compile_context>

<pallas_src>
import functools

import jax
import jax.numpy as jnp
from jax.experimental import pallas as pl
from jax.experimental.pallas import tpu as pltpu


def _accumulate_pool(x_ref, sum_ref, max_ref, *, total_s):
    """Shared streaming (sum, max) accumulation over lane-tiled spatial blocks."""
    s = pl.program_id(1)
    n_s = pl.num_programs(1)
    ts = x_ref.shape[-1]

    @pl.when(s == 0)
    def _init():
        sum_ref[...] = jnp.zeros_like(sum_ref)
        max_ref[...] = jnp.full_like(max_ref, -jnp.inf)

    x_raw = x_ref[...]  # (1, C, TS) in native dtype

    def _acc(x_for_sum, x_for_max):
        # Sum accumulates in f32; max stays in the input dtype until the
        # (1, C) partial result is folded into the f32 running max.
        sum_ref[...] = sum_ref[...] + jnp.sum(
            x_for_sum.astype(jnp.float32), axis=-1)
        max_ref[...] = jnp.maximum(
            max_ref[...], jnp.max(x_for_max, axis=-1).astype(jnp.float32))

    if total_s % ts != 0:
        # Only the ragged final block pays for the lane mask; all full blocks
        # take the unmasked fast path.
        @pl.when(s < n_s - 1)
        def _full_blocks():
            _acc(x_raw, x_raw)

        @pl.when(s == n_s - 1)
        def _last_block():
            lane = jax.lax.broadcasted_iota(jnp.int32, x_raw.shape, 2)
            valid = (s * ts + lane) < total_s
            zero = jnp.zeros((), dtype=x_raw.dtype)
            neg_inf = jnp.asarray(-jnp.inf, dtype=x_raw.dtype)
            _acc(jnp.where(valid, x_raw, zero),
                 jnp.where(valid, x_raw, neg_inf))
    else:
        _acc(x_raw, x_raw)


def _channel_attention_fused_kernel(x_ref, w1_ref, w2_ref, o_ref,
                                    sum_ref, max_ref, *, total_s):
    # x_ref: (1, C, TS)   w1_ref: (C, Ch)   w2_ref: (Ch, C)   o_ref: (1, C)
    _accumulate_pool(x_ref, sum_ref, max_ref, total_s=total_s)

    s = pl.program_id(1)
    n_s = pl.num_programs(1)

    @pl.when(s == n_s - 1)
    def _finalize():
        avg = sum_ref[...] * jnp.float32(1.0 / total_s)       # (1, C)
        mx = max_ref[...]                                      # (1, C)
        pooled = jnp.concatenate([avg, mx], axis=0)            # (2, C) f32

        # Feed weights to the MXU in their native dtype; cast the tiny pooled
        # operand down instead of upcasting the (larger) weights.
        w_dtype = w1_ref.dtype
        if w_dtype != jnp.float32:
            pooled = pooled.astype(w_dtype)
        h = jnp.dot(pooled, w1_ref[...], preferred_element_type=jnp.float32)
        h = jnp.maximum(h, 0.0)                                 # ReLU
        if w_dtype != jnp.float32:
            h = h.astype(w_dtype)
        y = jnp.dot(h, w2_ref[...], preferred_element_type=jnp.float32)

        logits = y[0:1, :] + y[1:2, :]                          # (1, C)
        o_ref[...] = jax.nn.sigmoid(logits).astype(o_ref.dtype)


def _pooled_stats_kernel(x_ref, o_ref, sum_ref, max_ref, *, total_s):
    # Emits pooled (avg, max) stats -> o_ref: (1, 2, C) f32.  FC is batched in XLA.
    _accumulate_pool(x_ref, sum_ref, max_ref, total_s=total_s)

    s = pl.program_id(1)
    n_s = pl.num_programs(1)

    @pl.when(s == n_s - 1)
    def _finalize():
        avg = sum_ref[...] * jnp.float32(1.0 / total_s)        # (1, C)
        mx = max_ref[...]                                       # (1, C)
        o_ref[...] = jnp.concatenate([avg, mx], axis=0)[None].astype(o_ref.dtype)


def _pick_spatial_tile(S, C, itemsize, budget_bytes):
    """Largest lane-aligned (x128) spatial tile whose double buffer fits budget."""
    if S <= 128:
        return S
    per_buf = budget_bytes // 2                 # 2 buffers (BlockSpec pipelining)
    ts = per_buf // max(1, C * itemsize)
    ts = max(128, (ts // 128) * 128)
    return min(ts, pl.cdiv(S, 128) * 128)


def channel_attention(x, w1, w2, *, spatial_tile=None, fuse_fc=None,
                      vmem_budget_bytes=24 * 1024 * 1024):
    """x: (N, C, D, H, W) NCDHW.  w1: (C//16, C) first 1x1x1 conv weight,
    w2: (C, C//16) second 1x1x1 conv weight (both bias-free, as in PyTorch).
    Returns sigmoid(fc(avg_pool) + fc(max_pool)) of shape (N, C, 1, 1, 1)."""
    N, C, D, H, W = x.shape
    S = D * H * W
    Ch = w1.shape[0]

    x3 = x.reshape(N, C, S)
    # Pre-transpose weights so the kernel contracts on the last axis.
    w1t = jnp.transpose(w1)   # (C, Ch)
    w2t = jnp.transpose(w2)   # (Ch, C)

    itemsize = x.dtype.itemsize
    ts = spatial_tile if spatial_tile is not None else _pick_spatial_tile(
        S, C, itemsize, vmem_budget_bytes)
    if ts >= S or S <= 128:
        ts = S                                   # full-extent block (always legal)
    else:
        ts = max(128, (ts // 128) * 128)         # lane-aligned tile
    num_s = pl.cdiv(S, ts)

    if fuse_fc is None:
        # Small spatial volumes: per-sample in-kernel FC would dominate, so
        # emit pooled stats and batch the FC over all samples in XLA instead.
        fuse_fc = S >= 4096

    # Explicit scoped-VMEM limit sized from actual usage (double-buffered x
    # tiles + weights + scratch + output) with headroom; stays within every
    # generation's physical VMEM (v5e default scoped limit is only 16 MiB).
    w_bytes = w1.size * w1.dtype.itemsize + w2.size * w2.dtype.itemsize
    x_block_bytes = C * ts * itemsize
    out_block_bytes = (C * itemsize) if fuse_fc else (2 * C * 4)
    need = 2 * x_block_bytes + 2 * w_bytes + 2 * out_block_bytes + 2 * (C * 4)
    vmem_limit = int(min(max(need + (4 << 20), 16 << 20), 48 << 20))
    vmem_limit = int(max(vmem_limit, need + (2 << 20)))

    compiler_params = pltpu.CompilerParams(
        dimension_semantics=("parallel", "arbitrary"),
        vmem_limit_bytes=vmem_limit,
    )

    cost = pl.CostEstimate(
        flops=2 * N * C * S + 8 * N * C * Ch,    # pooling + two tiny FCs (x2 branches)
        transcendentals=N * C,                   # sigmoid exp
        bytes_accessed=x3.size * itemsize + w_bytes + N * C * itemsize,
    )

    scratch = [
        pltpu.VMEM((1, C), jnp.float32),   # running sum
        pltpu.VMEM((1, C), jnp.float32),   # running max
    ]

    if fuse_fc:
        kernel = functools.partial(_channel_attention_fused_kernel, total_s=S)
        out = pl.pallas_call(
            kernel,
            out_shape=jax.ShapeDtypeStruct((N, C), x.dtype),
            grid_spec=pltpu.PrefetchScalarGridSpec(
                num_scalar_prefetch=0,
                grid=(N, num_s),
                in_specs=[
                    pl.BlockSpec((1, C, ts), lambda n, s: (n, 0, s)),
                    pl.BlockSpec((C, Ch), lambda n, s: (0, 0)),   # VMEM-resident
                    pl.BlockSpec((Ch, C), lambda n, s: (0, 0)),
                ],
                out_specs=pl.BlockSpec((1, C), lambda n, s: (n, 0)),
                scratch_shapes=scratch,
            ),
            compiler_params=compiler_params,
            cost_estimate=cost,
        )(x3, w1t, w2t)
        return out.reshape(N, C, 1, 1, 1)

    kernel = functools.partial(_pooled_stats_kernel, total_s=S)
    pooled = pl.pallas_call(
        kernel,
        out_shape=jax.ShapeDtypeStruct((N, 2, C), jnp.float32),
        grid_spec=pltpu.PrefetchScalarGridSpec(
            num_scalar_prefetch=0,
            grid=(N, num_s),
            in_specs=[pl.BlockSpec((1, C, ts), lambda n, s: (n, 0, s))],
            out_specs=pl.BlockSpec((1, 2, C), lambda n, s: (n, 0, 0)),
            scratch_shapes=scratch,
        ),
        compiler_params=compiler_params,
        cost_estimate=cost,
    )(x3)

    # Batched shared-MLP + sigmoid: one well-shaped (2N, C) MXU pass per layer.
    flat = pooled.reshape(N * 2, C)
    h = jnp.maximum(
        jnp.dot(flat, w1t.astype(jnp.float32),
                preferred_element_type=jnp.float32), 0.0)
    y = jnp.dot(h, w2t.astype(jnp.float32),
                preferred_element_type=jnp.float32)
    logits = y.reshape(N, 2, C).sum(axis=1)                    # avg-branch + max-branch
    out = jax.nn.sigmoid(logits).astype(x.dtype)
    return out.reshape(N, C, 1, 1, 1)


def reference(x, w1, w2):
    # Pure-JAX reference for sanity checking.
    xf = x.astype(jnp.float32)
    avg = jnp.mean(xf, axis=(2, 3, 4))
    mx = jnp.max(xf, axis=(2, 3, 4))

    def fc(v):
        h = jnp.maximum(v @ w1.astype(jnp.float32).T, 0.0)
        return h @ w2.astype(jnp.float32).T

    out = jax.nn.sigmoid(fc(avg) + fc(mx))
    return out.reshape(x.shape[0], x.shape[1], 1, 1, 1).astype(x.dtype)


if __name__ == "__main__":
    # Note: the PyTorch module hardcodes //16 (ignores `ratio`), so C >= 16.
    N, C, D, H, W = 2, 32, 4, 8, 9    # S = 288 (intentionally not a multiple of 128)
    Ch = C // 16

    key = jax.random.PRNGKey(0)
    kx, k1, k2 = jax.random.split(key, 3)

    x = jax.random.normal(kx, (N, C, D, H, W), dtype=jnp.float32)
    # Deterministic synthetic weights for the two 1x1x1 convs (no bias).
    w1 = jax.random.normal(k1, (Ch, C), dtype=jnp.float32) * 0.1
    w2 = jax.random.normal(k2, (C, Ch), dtype=jnp.float32) * 0.1

    y_ref = reference(x, w1, w2)

    # 1) Auto config: small S -> pooled-stats kernel + batched FC in XLA.
    y = jax.block_until_ready(channel_attention(x, w1, w2))
    assert y.shape == (N, C, 1, 1, 1)
    assert jnp.allclose(y, y_ref, atol=1e-5, rtol=1e-5), "mismatch (auto path)"

    # 2) Forced small tile: multi-step accumulation + ragged-last-block mask.
    y2 = jax.block_until_ready(channel_attention(x, w1, w2, spatial_tile=128))
    assert jnp.allclose(y2, y_ref, atol=1e-5, rtol=1e-5), "mismatch (tiled path)"

    # 3) Fused in-kernel FC epilogue (the large-S configuration).
    y3 = jax.block_until_ready(channel_attention(x, w1, w2, fuse_fc=True))
    assert jnp.allclose(y3, y_ref, atol=1e-5, rtol=1e-5), "mismatch (fused path)"

    print("KERNEL_OK")
</pallas_src>

<mosaic_0001>
module attributes {stable_mosaic.version = 11 : i64} {
  func.func @_pooled_stats_kernel(%arg0: i32, %arg1: i32, %arg2: memref<1x32x288xf32, #tpu.memory_space<vmem>>, %arg3: memref<1x2x32xf32, #tpu.memory_space<vmem>>, %arg4: memref<1x32xf32, #tpu.memory_space<vmem>>, %arg5: memref<1x32xf32, #tpu.memory_space<vmem>>) attributes {dimension_semantics = [#tpu.dimension_semantics<parallel>, #tpu.dimension_semantics<arbitrary>], iteration_bounds = array<i64: 2, 1>, scalar_prefetch = 0 : i64, scratch_operands = 2 : i64, tpu.core_type = #tpu.core_type<tc>, window_params = [{transform_indices = @transform_0, window_bounds = array<i64: 1, 32, 288>}, {transform_indices = @transform_1, window_bounds = array<i64: 1, 2, 32>}]} {
    %c0_i32 = arith.constant 0 : i32
    %0 = arith.cmpi eq, %arg1, %c0_i32 : i32
    %1 = arith.extui %0 : i1 to i32
    %c0_i32_0 = arith.constant 0 : i32
    %2 = arith.cmpi ne, %1, %c0_i32_0 : i32
    scf.if %2 {
      %cst_14 = arith.constant 0.000000e+00 : f32
      %15 = vector.broadcast %cst_14 : f32 to vector<1x32xf32>
      %c0_15 = arith.constant 0 : index
      %c0_16 = arith.constant 0 : index
      %16 = vector.load %arg4[%c0_15, %c0_16] : memref<1x32xf32, #tpu.memory_space<vmem>>, vector<1x32xf32>
      tpu.vector_store %arg4[%c0_15, %c0_16], %15 {strides = array<i32>} : memref<1x32xf32, #tpu.memory_space<vmem>>, vector<1x32xf32>,
      %cst_17 = arith.constant 0xFF800000 : f32
      %17 = vector.broadcast %cst_17 : f32 to vector<1x32xf32>
      %c0_18 = arith.constant 0 : index
      %c0_19 = arith.constant 0 : index
      %18 = vector.load %arg5[%c0_18, %c0_19] : memref<1x32xf32, #tpu.memory_space<vmem>>, vector<1x32xf32>
      tpu.vector_store %arg5[%c0_18, %c0_19], %17 {strides = array<i32>} : memref<1x32xf32, #tpu.memory_space<vmem>>, vector<1x32xf32>,
    } else {
    }
    %c0 = arith.constant 0 : index
    %c0_1 = arith.constant 0 : index
    %c0_2 = arith.constant 0 : index
    %3 = vector.load %arg2[%c0, %c0_1, %c0_2] : memref<1x32x288xf32, #tpu.memory_space<vmem>>, vector<1x32x288xf32>
    %c0_3 = arith.constant 0 : index
    %c0_4 = arith.constant 0 : index
    %4 = vector.load %arg4[%c0_3, %c0_4] : memref<1x32xf32, #tpu.memory_space<vmem>>, vector<1x32xf32>
    %cst = arith.constant dense<0.000000e+00> : vector<1x32xf32>
    %5 = vector.multi_reduction <add>, %3, %cst [2] : vector<1x32x288xf32> to vector<1x32xf32>
    %6 = arith.addf %4, %5 : vector<1x32xf32>
    %c0_5 = arith.constant 0 : index
    %c0_6 = arith.constant 0 : index
    %7 = vector.load %arg4[%c0_5, %c0_6] : memref<1x32xf32, #tpu.memory_space<vmem>>, vector<1x32xf32>
    tpu.vector_store %arg4[%c0_5, %c0_6], %6 {strides = array<i32>} : memref<1x32xf32, #tpu.memory_space<vmem>>, vector<1x32xf32>,
    %c0_7 = arith.constant 0 : index
    %c0_8 = arith.constant 0 : index
    %8 = vector.load %arg5[%c0_7, %c0_8] : memref<1x32xf32, #tpu.memory_space<vmem>>, vector<1x32xf32>
    %cst_9 = arith.constant dense<0xFF800000> : vector<1x32xf32>
    %9 = vector.multi_reduction <maximumf>, %3, %cst_9 [2] : vector<1x32x288xf32> to vector<1x32xf32>
    %10 = arith.maximumf %8, %9 : vector<1x32xf32>
    %c0_10 = arith.constant 0 : index
    %c0_11 = arith.constant 0 : index
    %11 = vector.load %arg5[%c0_10, %c0_11] : memref<1x32xf32, #tpu.memory_space<vmem>>, vector<1x32xf32>
    tpu.vector_store %arg5[%c0_10, %c0_11], %10 {strides = array<i32>} : memref<1x32xf32, #tpu.memory_space<vmem>>, vector<1x32xf32>,
    %c0_i32_12 = arith.constant 0 : i32
    %12 = arith.cmpi eq, %arg1, %c0_i32_12 : i32
    %13 = arith.extui %12 : i1 to i32
    %c0_i32_13 = arith.constant 0 : i32
    %14 = arith.cmpi ne, %13, %c0_i32_13 : i32
    scf.if %14 {
      %c0_14 = arith.constant 0 : index
      %c0_15 = arith.constant 0 : index
      %15 = vector.load %arg4[%c0_14, %c0_15] : memref<1x32xf32, #tpu.memory_space<vmem>>, vector<1x32xf32>
      %cst_16 = arith.constant 0.00347222225 : f32
      %16 = vector.broadcast %cst_16 : f32 to vector<1x32xf32>
      %17 = arith.mulf %15, %16 : vector<1x32xf32>
      %c0_17 = arith.constant 0 : index
      %c0_18 = arith.constant 0 : index
      %18 = vector.load %arg5[%c0_17, %c0_18] : memref<1x32xf32, #tpu.memory_space<vmem>>, vector<1x32xf32>
      %19 = tpu.concatenate %17, %18 in 0 : vector<1x32xf32>, vector<1x32xf32> -> vector<2x32xf32>
      %20 = vector.shape_cast %19 : vector<2x32xf32> to vector<1x2x32xf32>
      %c0_19 = arith.constant 0 : index
      %c0_20 = arith.constant 0 : index
      %c0_21 = arith.constant 0 : index
      %21 = vector.load %arg3[%c0_19, %c0_20, %c0_21] : memref<1x2x32xf32, #tpu.memory_space<vmem>>, vector<1x2x32xf32>
      tpu.vector_store %arg3[%c0_19, %c0_20, %c0_21], %20 {strides = array<i32>} : memref<1x2x32xf32, #tpu.memory_space<vmem>>, vector<1x2x32xf32>,
    } else {
    }
    return
  }
  func.func @transform_0(%arg0: i32, %arg1: i32) -> (i32, i32, i32) {
    %c0_i32 = arith.constant 0 : i32
    %c0_i32_0 = arith.constant 0 : i32
    return %arg0, %c0_i32, %arg1 : i32, i32, i32
  }
  func.func @transform_1(%arg0: i32, %arg1: i32) -> (i32, i32, i32) {
    %c0_i32 = arith.constant 0 : i32
    %c0_i32_0 = arith.constant 0 : i32
    %c0_i32_1 = arith.constant 0 : i32
    return %arg0, %c0_i32, %c0_i32_0 : i32, i32, i32
  }
}

</mosaic_0001>

<llo_original>
// kernel: tpu_custom_call.1
$region0: #{tpu_custom_call.1}
  #allocation0 [shape = 'u32[]', space=smem, size = 0x4, offset = 0x4, fixed_abs, tag = 'smem constant byte address 0x4 - core index']
  #allocation1 [shape = 'u32[72,128]{1,0:T(1,128)}', space=vmem, size = 0x9000, scoped, tag = 'internal scratch']
  #allocation2 [shape = 'f32[1,32]{1,0:T(1,128)}', space=vmem, size = 0x200, scoped, tag = 'scratch operand']
  #allocation3 [shape = 'f32[1,32]{1,0:T(1,128)}', space=vmem, size = 0x200, scoped, tag = 'scratch operand']
  %s0 = inlined_call_operand.hbm [shape: f32[2,32,288], index: 0, kind: input, shape index: {}]
  %s1 = inlined_call_operand.hbm [shape: f32[2,2,32], index: 1, kind: output, shape index: {}]
  %s2 = sld [smem:[#allocation0]]
  $region49: #{tpu_custom_call.1} parent=0
    _
  %s4 = ssub.s32 1, %s2
  %s5 = scalar_select 0, %s4, %s2
  $region1: #{tpu_custom_call.1} parent=0
    #allocation4 [shape = 'u8[98304]{0}', space=vmem, size = 0x18000, scoped, tag = 'input window, operand 0']
    #allocation5 [shape = 's32[2]{0}', space=sflag, size = 0x8, scoped, tag = 'scoped memory for tpu_custom_call.1']
    #allocation6 [shape = 's32[2]{0}', space=sflag, size = 0x8, scoped, tag = 'scoped memory for tpu_custom_call.1']
    #allocation7 [shape = 'u8[2048]{0}', space=vmem, size = 0x800, scoped, tag = 'output window, operand 0']
    %6 = vsyncpa [#allocation5], 0
    %s7 = scalar_lea.sflag [#allocation5], 1
    %8 = vsyncpa %s7, 0
    %9 = vsyncpa [#allocation6], 0
    %s10 = scalar_lea.sflag [#allocation6], 1
    %11 = vsyncpa %s10, 0
    loop: start=0, step=1, limit=4
    $region2: #{tpu_custom_call.1} parent=1 // loop_pre_header
      _
    $region3: #{tpu_custom_call.1} parent=1 // loop_header
      %s13 = sphi 0, %s17
      %p14 = scmp.ge.s32.totalorder %s13, 4
      %s20 = sphi 0, %s32
      %s21 = sphi 0, %s28
      %s22 = sphi 0, %s20
      %s23 = sphi 0, %s21
      %s24 = sphi 0, %s22
      %s25 = sphi 0, %s23
      %s37 = sphi 0, %s39
      %s40 = sphi 0, %s37
      %s41 = sphi 0, %s40
      %s57 = sphi 0, %s41
      %s63 = sphi 0, %s65
      %s66 = sphi 0, %s63
      %s67 = sphi 0, %s66
      %s83 = sphi 0, %s67
    $region4: #{tpu_custom_call.1} parent=1 // loop_header_branch
      %16 = sbr.rel (%p14) target = $region8
    $region5: #{tpu_custom_call.1} parent=1 // loop_body
      %s18 = ssub.s32 %s13, 1
      %s19 = ssub.s32 %s13, 2
      %s26 = sadd.s32 1, %s21
      %p27 = scmp.ge.s32.totalorder %s26, 1
      %s28 = scalar_select %p27, 0, %s26
      %s29 = sadd.s32 1, %s20
      %s30 = scalar_select %p27, %s29, %s20
      %p31 = scmp.ge.s32.totalorder %s30, 2
      %s32 = scalar_select %p31, 0, %s30
      %s33 = ssub.s32 %s20, %s32
      %s34 = ssub.s32 %s21, %s28
      %s35 = sor.u32 %s33, %s34
      %p36 = scmp.eq.s32.totalorder %s35, 0
      %s38 = sadd.s32 %s37, 1
      %s39 = scalar_select %p36, %s37, %s38
      %p42 = pneg %p36
      %p43 = scmp.eq.s32.totalorder %s13, 1
      %p44 = por %p42, %p43
      %p45 = scmp.ne.s32.totalorder %s37, %s40
      %p46 = scmp.eq.s32.totalorder %s13, 0
      %p47 = por %p45, %p46
      %p48 = scmp.ne.s32.totalorder %s37, %s40
      %p49 = scmp.eq.s32.totalorder %s18, 1
      %p50 = por %p48, %p49
      %p51 = scmp.ne.s32.totalorder %s40, %s41
      %p52 = scmp.eq.s32.totalorder %s18, 0
      %p53 = por %p51, %p52
      %p54 = scmp.ne.s32.totalorder %s40, %s41
      %p55 = scmp.eq.s32.totalorder %s19, 1
      %p56 = por %p54, %p55
      %p58 = scmp.ne.s32.totalorder %s41, %s57
      %p59 = scmp.eq.s32.totalorder %s19, 0
      %p60 = por %p58, %p59
      %s61 = ssub.s32 %s20, %s32
      %p62 = scmp.eq.s32.totalorder %s61, 0
      %s64 = sadd.s32 %s63, 1
      %s65 = scalar_select %p62, %s63, %s64
      %p68 = pneg %p62
      %p69 = scmp.eq.s32.totalorder %s13, 1
      %p70 = por %p68, %p69
      %p71 = scmp.ne.s32.totalorder %s63, %s66
      %p72 = scmp.eq.s32.totalorder %s13, 0
      %p73 = por %p71, %p72
      %p74 = scmp.ne.s32.totalorder %s63, %s66
      %p75 = scmp.eq.s32.totalorder %s18, 1
      %p76 = por %p74, %p75
      %p77 = scmp.ne.s32.totalorder %s66, %s67
      %p78 = scmp.eq.s32.totalorder %s18, 0
      %p79 = por %p77, %p78
      %p80 = scmp.ne.s32.totalorder %s66, %s67
      %p81 = scmp.eq.s32.totalorder %s19, 1
      %p82 = por %p80, %p81
      %p84 = scmp.ne.s32.totalorder %s67, %s83
      %p85 = scmp.eq.s32.totalorder %s19, 0
      %p86 = por %p84, %p85
      %p87 = scmp.le.s32.totalorder 1, %s13
      %p88 = scmp.lt.s32.totalorder %s13, 3
      %p89 = pnand %p87, %p88
      %p90 = pneg %p89
      // Predicated region
      $region9: #{tpu_custom_call.1} parent=5 // pred_check
        _
      $region10: #{tpu_custom_call.1} parent=5 // pred_check_branch
        %92 = sbr.rel (%p89) target = $region12
      $region11: #{tpu_custom_call.1} parent=5 // pred_region
        %s93 = ssub.s32 %s13, 1
      $region12: #{tpu_custom_call.1} parent=5 // pred_fallthru
        _
      %p94 = scmp.lt.s32.totalorder %s13, 2
      // Predicated region
      $region13: #{tpu_custom_call.1} parent=5 // pred_check
        %p95 = pneg %p94
      $region14: #{tpu_custom_call.1} parent=5 // pred_check_branch
        %97 = sbr.rel (%p95) target = $region16
      $region15: #{tpu_custom_call.1} parent=5 // pred_region
        // Predicated region
        $region17: #{tpu_custom_call.1} parent=15 // pred_check
          %p98 = pneg %p47
        $region18: #{tpu_custom_call.1} parent=15 // pred_check_branch
          %100 = sbr.rel (%p98) target = $region20
        $region19: #{tpu_custom_call.1} parent=15 // pred_region
          %s101 = sand.u32 %s37, 1
          %s102 = scalar_lea.sflag [#allocation5], %s101
          %s103 = sand.u32 %s37, 1
          %s104 = smul.addr %s103, 96
          %s105 = scalar_lea.vmem [#allocation4], %s104
          %s106 = smul.u32 3, %s21
          %108 = vsyncadd %s102, 0
          %s109 = smul.addr %s20, 12
          %s110 = sadd.s32 %s106, %s109
          %s111 = smul.addr %s110, 8
          %s112 = scalar_lea.hbm %s0, %s111
          %s113 = sshll.u32 %s112, 4
          %s114 = int_to_ptr.hbm [resolvable:$true] %s113
          %s115 = sshll.u32 %s105, 4
          %s116 = int_to_ptr.vmem [resolvable:$true] %s115
          %121 = dma.hbm_to_vmem [thread:$0]  %s114, 1536, %s116, %s102, 384, 384, 24
        $region20: #{tpu_custom_call.1} parent=15 // pred_fallthru
          _
      $region16: #{tpu_custom_call.1} parent=5 // pred_fallthru
        _
      %p122 = scmp.le.s32.totalorder 1, %s13
      %p123 = scmp.lt.s32.totalorder %s13, 3
      %p124 = pnand %p122, %p123
      %p125 = pneg %p124
      // Predicated region
      $region21: #{tpu_custom_call.1} parent=5 // pred_check
        _
      $region22: #{tpu_custom_call.1} parent=5 // pred_check_branch
        %127 = sbr.rel (%p124) target = $region24
      $region23: #{tpu_custom_call.1} parent=5 // pred_region
        %s128 = ssub.s32 %s13, 1
        %s129 = sand.u32 %s40, 1
        %s130 = scalar_lea.sflag [#allocation5], %s129
        %s131 = sand.u32 %s40, 1
        %s132 = smul.addr %s131, 96
        %s133 = scalar_lea.vmem [#allocation4], %s132
        // Predicated region
        $region25: #{tpu_custom_call.1} parent=23 // pred_check
          %p134 = pneg %p53
        $region26: #{tpu_custom_call.1} parent=23 // pred_check_branch
          %136 = sbr.rel (%p134) target = $region28
        $region27: #{tpu_custom_call.1} parent=23 // pred_region
          %138 = dma.done %s130, 1536
        $region28: #{tpu_custom_call.1} parent=23 // pred_fallthru
          _
        %s139 = sand.u32 %s40, 1
        %s140 = scalar_lea.sflag [#allocation5], %s139
        %s141 = sand.u32 %s40, 1
        %s142 = smul.addr %s141, 96
        %s143 = scalar_lea.vmem [#allocation4], %s142
        %p144 = pneg %p53
        %p145 = pneg %p50
        %p146 = pneg %p79
        %p147 = pneg %p76
        %s148 = sand.u32 %s66, 1
        %s149 = scalar_lea.sflag [#allocation6], %s148
        %s150 = sand.u32 %s66, 1
        %s151 = smul.addr %s150, 2
        %s152 = scalar_lea.vmem [#allocation7], %s151
        %s153 = smul.u32 3, %s23
        %p154 = scmp.eq.s32.totalorder %s23, 0
        // Predicated region
        $region29: #{tpu_custom_call.1} parent=23 // pred_check
          %p155 = pneg %p154
        $region30: #{tpu_custom_call.1} parent=23 // pred_check_branch
          %157 = sbr.rel (%p155) target = $region32
        $region31: #{tpu_custom_call.1} parent=23 // pred_region
          %vm158 = vcmask 253952
          %159 = vst.msk [vmem:[#allocation2] sm:$0x1] %vm158, 0.0
          %160 = vst.msk [vmem:[#allocation3] sm:$0x1] %vm158, -inf
        $region32: #{tpu_custom_call.1} parent=23 // pred_fallthru
          _
        %v161 = vld [vmem:[%s133] sm:$0xff]
        %v162 = vld [vmem:[%s133 + $0x8] sm:$0xff]
        %v163 = vld [vmem:[%s133 + $0x10] sm:$0xff]
        %v164 = vld [vmem:[%s133 + $0x18] sm:$0xff]
        %v165 = vld [vmem:[%s133 + $0x20] sm:$0xff]
        %v166 = vld [vmem:[%s133 + $0x28] sm:$0xff]
        %v167 = vld [vmem:[%s133 + $0x30] sm:$0xff]
        %v168 = vld [vmem:[%s133 + $0x38] sm:$0xff]
        %v169 = vld [vmem:[%s133 + $0x40] sm:$0xff]
        %v170 = vld [vmem:[%s133 + $0x48] sm:$0xff]
        %v171 = vld [vmem:[%s133 + $0x50] sm:$0xff]
        %v172 = vld [vmem:[%s133 + $0x58] sm:$0xff]
        %v173 = vld [vmem:[#allocation2] sm:$0x1]
        %v174 = vadd.f32 %v161, %v162
        %vm175 = vcmask 261120
        %v176 = vsel %vm175, %v163, 0.0
        %v177 = vadd.f32 %v174, %v176
        %178 = vadd.xlane.f32.xlu0 %v177
        %v179 = vpop.xlane.xlu0 %178
        %v180 = vadd.f32 %v164, %v165
        %v181 = vsel %vm175, %v166, 0.0
        %v182 = vadd.f32 %v180, %v181
        %183 = vadd.xlane.f32.xlu0 %v182
        %v184 = vpop.xlane.xlu0 %183
        %v185 = vadd.f32 %v167, %v168
        %v186 = vsel %vm175, %v169, 0.0
        %v187 = vadd.f32 %v185, %v186
        %188 = vadd.xlane.f32.xlu0 %v187
        %v189 = vpop.xlane.xlu0 %188
        %v190 = vadd.f32 %v170, %v171
        %v191 = vsel %vm175, %v172, 0.0
        %v192 = vadd.f32 %v190, %v191
        %193 = vadd.xlane.f32.xlu0 %v192
        %v194 = vpop.xlane.xlu0 %193
        %v199 = vperm.slane %v179, 0
        %v200 = vperm.slane %v179, 1
        %v201 = vperm.slane %v179, 2
        %v202 = vperm.slane %v179, 3
        %v203 = vperm.slane %v179, 4
        %v204 = vperm.slane %v179, 5
        %v205 = vperm.slane %v179, 6
        %v206 = vperm.slane %v179, 7
        %v207 = vperm.slane %v184, 0
        %v208 = vperm.slane %v184, 1
        %v209 = vperm.slane %v184, 2
        %v210 = vperm.slane %v184, 3
        %v211 = vperm.slane %v184, 4
        %v212 = vperm.slane %v184, 5
        %v213 = vperm.slane %v184, 6
        %v214 = vperm.slane %v184, 7
        %v215 = vperm.slane %v189, 0
        %v216 = vperm.slane %v189, 1
        %v217 = vperm.slane %v189, 2
        %v218 = vperm.slane %v189, 3
        %v219 = vperm.slane %v189, 4
        %v220 = vperm.slane %v189, 5
        %v221 = vperm.slane %v189, 6
        %v222 = vperm.slane %v189, 7
        %v223 = vperm.slane %v194, 0
        %v224 = vperm.slane %v194, 1
        %v225 = vperm.slane %v194, 2
        %v226 = vperm.slane %v194, 3
        %v227 = vperm.slane %v194, 4
        %v228 = vperm.slane %v194, 5
        %v229 = vperm.slane %v194, 6
        %v230 = vperm.slane %v194, 7
        %231 = vst [vmem:[#allocation1] ss:$9 sm:$0xff] %v199
        %s232 = scalar_lea.vmem [#allocation1], 1
        %233 = vst [vmem:[%s232] ss:$9 sm:$0xff] %v200
        %s234 = scalar_lea.vmem [#allocation1], 2
        %235 = vst [vmem:[%s234] ss:$9 sm:$0xff] %v201
        %s236 = scalar_lea.vmem [#allocation1], 3
        %237 = vst [vmem:[%s236] ss:$9 sm:$0xff] %v202
        %s238 = scalar_lea.vmem [#allocation1], 4
        %239 = vst [vmem:[%s238] ss:$9 sm:$0xff] %v203
        %s240 = scalar_lea.vmem [#allocation1], 5
        %241 = vst [vmem:[%s240] ss:$9 sm:$0xff] %v204
        %s242 = scalar_lea.vmem [#allocation1], 6
        %243 = vst [vmem:[%s242] ss:$9 sm:$0xff] %v205
        %s244 = scalar_lea.vmem [#allocation1], 7
        %245 = vst [vmem:[%s244] ss:$9 sm:$0xff] %v206
        %v246 = vld [vmem:[#allocation1] sm:$0xff]
        %247 = vst [vmem:[#allocation1] ss:$9 sm:$0xff] %v207
        %248 = vst [vmem:[%s232] ss:$9 sm:$0xff] %v208
        %249 = vst [vmem:[%s234] ss:$9 sm:$0xff] %v209
        %250 = vst [vmem:[%s236] ss:$9 sm:$0xff] %v210
        %251 = vst [vmem:[%s238] ss:$9 sm:$0xff] %v211
        %252 = vst [vmem:[%s240] ss:$9 sm:$0xff] %v212
        %253 = vst [vmem:[%s242] ss:$9 sm:$0xff] %v213
        %254 = vst [vmem:[%s244] ss:$9 sm:$0xff] %v214
        %v255 = vld [vmem:[#allocation1] sm:$0xff]
        %256 = vst [vmem:[#allocation1] ss:$9 sm:$0xff] %v215
        %257 = vst [vmem:[%s232] ss:$9 sm:$0xff] %v216
        %258 = vst [vmem:[%s234] ss:$9 sm:$0xff] %v217
        %259 = vst [vmem:[%s236] ss:$9 sm:$0xff] %v218
        %260 = vst [vmem:[%s238] ss:$9 sm:$0xff] %v219
        %261 = vst [vmem:[%s240] ss:$9 sm:$0xff] %v220
        %262 = vst [vmem:[%s242] ss:$9 sm:$0xff] %v221
        %263 = vst [vmem:[%s244] ss:$9 sm:$0xff] %v222
        %v264 = vld [vmem:[#allocation1] sm:$0xff]
        %265 = vst [vmem:[#allocation1] ss:$9 sm:$0xff] %v223
        %266 = vst [vmem:[%s232] ss:$9 sm:$0xff] %v224
        %267 = vst [vmem:[%s234] ss:$9 sm:$0xff] %v225
        %268 = vst [vmem:[%s236] ss:$9 sm:$0xff] %v226
        %269 = vst [vmem:[%s238] ss:$9 sm:$0xff] %v227
        %270 = vst [vmem:[%s240] ss:$9 sm:$0xff] %v228
        %271 = vst [vmem:[%s242] ss:$9 sm:$0xff] %v229
        %272 = vst [vmem:[%s244] ss:$9 sm:$0xff] %v230
        %v273 = vld [vmem:[#allocation1] sm:$0xff]
        %274 = vset.pattern.permute.xlu0 0
        %275 = vperm.xlu0 %274, %v246
        %v276 = vpop.permute.xlu0 %275
        %277 = vset.pattern.permute.xlu0 0
        %278 = vperm.xlu0 %277, %v255
        %v279 = vpop.permute.xlu0 %278
        %280 = vset.pattern.permute.xlu0 0
        %281 = vperm.xlu0 %280, %v264
        %v282 = vpop.permute.xlu0 %281
        %283 = vset.pattern.permute.xlu0 0
        %284 = vperm.xlu0 %283, %v273
        %v285 = vpop.permute.xlu0 %284
        %v286 = vlaneseq
        %v287 = vand.u32 %v286, 127
        %v288 = vperm.slane %v276, %v287
        %v289 = vadd.s32 %v287, 4294967288
        %v290 = vperm.slane %v279, %v289
        %vm291 = vcmask 130112
        %v292 = vsel %vm291, %v290, %v288
        %v293 = vadd.s32 %v287, 4294967280
        %v294 = vperm.slane %v282, %v293
        %vm295 = vcmask 195712
        %v296 = vsel %vm295, %v294, %v292
        %v297 = vadd.s32 %v287, 4294967272
        %v298 = vperm.slane %v285, %v297
        %vm299 = vcmask 261312
        %v300 = vsel %vm299, %v298, %v296
        %v302 = vadd.f32 %v173, %v300
        %vm303 = vcmask 253952
        %304 = vst.msk [vmem:[#allocation2] sm:$0x1] %vm303, %v302
        %v305 = vld [vmem:[#allocation3] sm:$0x1]
        %v306 = vmax.f32 %v161, %v162
        %v307 = vsel %vm175, %v163, -inf
        %v308 = vmax.f32 %v306, %v307
        %309 = vmax.xlane.f32.xlu0 %v308
        %v310 = vpop.xlane.xlu0 %309
        %v311 = vmax.f32 %v164, %v165
        %v312 = vsel %vm175, %v166, -inf
        %v313 = vmax.f32 %v311, %v312
        %314 = vmax.xlane.f32.xlu0 %v313
        %v315 = vpop.xlane.xlu0 %314
        %v316 = vmax.f32 %v167, %v168
        %v317 = vsel %vm175, %v169, -inf
        %v318 = vmax.f32 %v316, %v317
        %319 = vmax.xlane.f32.xlu0 %v318
        %v320 = vpop.xlane.xlu0 %319
        %v321 = vmax.f32 %v170, %v171
        %v322 = vsel %vm175, %v172, -inf
        %v323 = vmax.f32 %v321, %v322
        %324 = vmax.xlane.f32.xlu0 %v323
        %v325 = vpop.xlane.xlu0 %324
        %v330 = vperm.slane %v310, 0
        %v331 = vperm.slane %v310, 1
        %v332 = vperm.slane %v310, 2
        %v333 = vperm.slane %v310, 3
        %v334 = vperm.slane %v310, 4
        %v335 = vperm.slane %v310, 5
        %v336 = vperm.slane %v310, 6
        %v337 = vperm.slane %v310, 7
        %v338 = vperm.slane %v315, 0
        %v339 = vperm.slane %v315, 1
        %v340 = vperm.slane %v315, 2
        %v341 = vperm.slane %v315, 3
        %v342 = vperm.slane %v315, 4
        %v343 = vperm.slane %v315, 5
        %v344 = vperm.slane %v315, 6
        %v345 = vperm.slane %v315, 7
        %v346 = vperm.slane %v320, 0
        %v347 = vperm.slane %v320, 1
        %v348 = vperm.slane %v320, 2
        %v349 = vperm.slane %v320, 3
        %v350 = vperm.slane %v320, 4
        %v351 = vperm.slane %v320, 5
        %v352 = vperm.slane %v320, 6
        %v353 = vperm.slane %v320, 7
        %v354 = vperm.slane %v325, 0
        %v355 = vperm.slane %v325, 1
        %v356 = vperm.slane %v325, 2
        %v357 = vperm.slane %v325, 3
        %v358 = vperm.slane %v325, 4
        %v359 = vperm.slane %v325, 5
        %v360 = vperm.slane %v325, 6
        %v361 = vperm.slane %v325, 7
        %362 = vst [vmem:[#allocation1] ss:$9 sm:$0xff] %v330
        %s363 = scalar_lea.vmem [#allocation1], 1
        %364 = vst [vmem:[%s363] ss:$9 sm:$0xff] %v331
        %s365 = scalar_lea.vmem [#allocation1], 2
        %366 = vst [vmem:[%s365] ss:$9 sm:$0xff] %v332
        %s367 = scalar_lea.vmem [#allocation1], 3
        %368 = vst [vmem:[%s367] ss:$9 sm:$0xff] %v333
        %s369 = scalar_lea.vmem [#allocation1], 4
        %370 = vst [vmem:[%s369] ss:$9 sm:$0xff] %v334
        %s371 = scalar_lea.vmem [#allocation1], 5
        %372 = vst [vmem:[%s371] ss:$9 sm:$0xff] %v335
        %s373 = scalar_lea.vmem [#allocation1], 6
        %374 = vst [vmem:[%s373] ss:$9 sm:$0xff] %v336
        %s375 = scalar_lea.vmem [#allocation1], 7
        %376 = vst [vmem:[%s375] ss:$9 sm:$0xff] %v337
        %v377 = vld [vmem:[#allocation1] sm:$0xff]
        %378 = vst [vmem:[#allocation1] ss:$9 sm:$0xff] %v338
        %379 = vst [vmem:[%s363] ss:$9 sm:$0xff] %v339
        %380 = vst [vmem:[%s365] ss:$9 sm:$0xff] %v340
        %381 = vst [vmem:[%s367] ss:$9 sm:$0xff] %v341
        %382 = vst [vmem:[%s369] ss:$9 sm:$0xff] %v342
        %383 = vst [vmem:[%s371] ss:$9 sm:$0xff] %v343
        %384 = vst [vmem:[%s373] ss:$9 sm:$0xff] %v344
        %385 = vst [vmem:[%s375] ss:$9 sm:$0xff] %v345
        %v386 = vld [vmem:[#allocation1] sm:$0xff]
        %387 = vst [vmem:[#allocation1] ss:$9 sm:$0xff] %v346
        %388 = vst [vmem:[%s363] ss:$9 sm:$0xff] %v347
        %389 = vst [vmem:[%s365] ss:$9 sm:$0xff] %v348
        %390 = vst [vmem:[%s367] ss:$9 sm:$0xff] %v349
        %391 = vst [vmem:[%s369] ss:$9 sm:$0xff] %v350
        %392 = vst [vmem:[%s371] ss:$9 sm:$0xff] %v351
        %393 = vst [vmem:[%s373] ss:$9 sm:$0xff] %v352
        %394 = vst [vmem:[%s375] ss:$9 sm:$0xff] %v353
        %v395 = vld [vmem:[#allocation1] sm:$0xff]
        %396 = vst [vmem:[#allocation1] ss:$9 sm:$0xff] %v354
        %397 = vst [vmem:[%s363] ss:$9 sm:$0xff] %v355
        %398 = vst [vmem:[%s365] ss:$9 sm:$0xff] %v356
        %399 = vst [vmem:[%s367] ss:$9 sm:$0xff] %v357
        %400 = vst [vmem:[%s369] ss:$9 sm:$0xff] %v358
        %401 = vst [vmem:[%s371] ss:$9 sm:$0xff] %v359
        %402 = vst [vmem:[%s373] ss:$9 sm:$0xff] %v360
        %403 = vst [vmem:[%s375] ss:$9 sm:$0xff] %v361
        %v404 = vld [vmem:[#allocation1] sm:$0xff]
        %405 = vset.pattern.permute.xlu0 0
        %406 = vperm.xlu0 %405, %v377
        %v407 = vpop.permute.xlu0 %406
        %408 = vset.pattern.permute.xlu0 0
        %409 = vperm.xlu0 %408, %v386
        %v410 = vpop.permute.xlu0 %409
        %411 = vset.pattern.permute.xlu0 0
        %412 = vperm.xlu0 %411, %v395
        %v413 = vpop.permute.xlu0 %412
        %414 = vset.pattern.permute.xlu0 0
        %415 = vperm.xlu0 %414, %v404
        %v416 = vpop.permute.xlu0 %415
        %v417 = vperm.slane %v407, %v287
        %v418 = vperm.slane %v410, %v289
        %v419 = vsel %vm291, %v418, %v417
        %v420 = vperm.slane %v413, %v293
        %v421 = vsel %vm295, %v420, %v419
        %v422 = vperm.slane %v416, %v297
        %v423 = vsel %vm299, %v422, %v421
        %v425 = vmax.f32 %v305, %v423
        %426 = vst.msk [vmem:[#allocation3] sm:$0x1] %vm303, %v425
        // Predicated region
        $region33: #{tpu_custom_call.1} parent=23 // pred_check
          %p427 = pneg %p154
        $region34: #{tpu_custom_call.1} parent=23 // pred_check_branch
          %429 = sbr.rel (%p427) target = $region36
        $region35: #{tpu_custom_call.1} parent=23 // pred_region
          %v430 = vld [vmem:[#allocation2] sm:$0x1]
          %v431 = vmul.f32 %v430, 0.0034722222
          %v432 = vld [vmem:[#allocation3] sm:$0x1]
          %v434 = vperm.slane %v432, 0
          %vm436 = vcmask 1040384
          %v437 = vsel %vm436, %v431, %v434
          %vm438 = vcmask 254976
          %439 = vst.msk [vmem:[%s152] sm:$0x3] %vm438, %v437
        $region36: #{tpu_custom_call.1} parent=23 // pred_fallthru
          _
        %s440 = sand.u32 %s66, 1
        %s441 = scalar_lea.sflag [#allocation6], %s440
        %s442 = sand.u32 %s66, 1
        %s443 = smul.addr %s442, 2
        %s444 = scalar_lea.vmem [#allocation7], %s443
        // Predicated region
        $region37: #{tpu_custom_call.1} parent=23 // pred_check
          %p445 = pneg %p76
        $region38: #{tpu_custom_call.1} parent=23 // pred_check_branch
          %447 = sbr.rel (%p445) target = $region40
        $region39: #{tpu_custom_call.1} parent=23 // pred_region
          %449 = vsyncadd %s441, 0
          %s450 = smul.addr %s22, 2
          %s451 = scalar_lea.hbm %s1, %s450
          %s453 = sshll.u32 %s444, 4
          %s454 = int_to_ptr.vmem [resolvable:$true] %s453
          %s455 = sshll.u32 %s451, 4
          %s456 = int_to_ptr.hbm [resolvable:$true] %s455
          %458 = dma.vmem_to_hbm [thread:$0]  %s454, 32, %s456, %s441
        $region40: #{tpu_custom_call.1} parent=23 // pred_fallthru
          _
      $region24: #{tpu_custom_call.1} parent=5 // pred_fallthru
        _
      %p459 = scmp.le.s32.totalorder 2, %s13
      // Predicated region
      $region41: #{tpu_custom_call.1} parent=5 // pred_check
        %p460 = pneg %p459
      $region42: #{tpu_custom_call.1} parent=5 // pred_check_branch
        %462 = sbr.rel (%p460) target = $region44
      $region43: #{tpu_custom_call.1} parent=5 // pred_region
        %s463 = ssub.s32 %s13, 2
        // Predicated region
        $region45: #{tpu_custom_call.1} parent=43 // pred_check
          %p464 = pneg %p82
        $region46: #{tpu_custom_call.1} parent=43 // pred_check_branch
          %466 = sbr.rel (%p464) target = $region48
        $region47: #{tpu_custom_call.1} parent=43 // pred_region
          %s467 = sand.u32 %s67, 1
          %s468 = scalar_lea.sflag [#allocation6], %s467
          %s469 = sand.u32 %s67, 1
          %s470 = smul.addr %s469, 2
          %s471 = scalar_lea.vmem [#allocation7], %s470
          %473 = dma.done %s468, 32
        $region48: #{tpu_custom_call.1} parent=43 // pred_fallthru
          _
      $region44: #{tpu_custom_call.1} parent=5 // pred_fallthru
        _
    $region6: #{tpu_custom_call.1} parent=1 // loop_footer
      %s17 = sadd.s32 1, %s13
    $region7: #{tpu_custom_call.1} parent=1 // loop_footer_branch
      %12 = sbr.rel target = $region3
    $region8: #{tpu_custom_call.1} parent=1 // loop_exit
      _
    %474 = vsyncpa [#allocation5], 1
    %s475 = scalar_lea.sflag [#allocation5], 1
    %476 = vsyncpa %s475, 1
    %477 = vsyncpa [#allocation6], 1
    %s478 = scalar_lea.sflag [#allocation6], 1
    %479 = vsyncpa %s478, 1

</llo_original>
